<compile_context>
chip_gen: v5e
topology: v5e:2x2
jax: 0.10.0
libtpu: 0.0.40
codegen_flags: <defaults>
</compile_context>

<pallas_src>
import functools

import jax
import jax.numpy as jnp
from jax.experimental import pallas as pl
from jax.experimental.pallas import tpu as pltpu


# --------------------------- kernel ------------------------------------------

def _tiny_vgg_kernel(x_ref, wc_ref, bc_ref, fcw_ref, fcb_ref, out_ref, *, width):
    """Whole network on one resident (C, NB*H*W) tile.

    Flat-grid lattice: activations keep the original H*W flat spatial grid per
    image; valid outputs of each stage live on a coarser lattice with flat
    strides (sh, sw), doubling after each pool.  Garbage columns (including
    cross-image / wrap-around contamination from the rolls) are computed but
    never read by any valid output, so only lane rotations, matmuls and
    elementwise ops are needed -- no reshape / gather / strided slice in-kernel.
    """
    m = x_ref.shape[-1]                        # NB * H * W lanes
    cpad = wc_ref.shape[-1] // 9               # per-tap input-channel count

    def shift(v, k):                           # out[:, q] = v[:, q + k] (wrap never read)
        return v if k == 0 else pltpu.roll(v, shift=m - k, axis=1)

    def conv3x3_relu(a, layer, sh, sw):
        if a.shape[0] < cpad:                  # only hit if in_feature > hidden_units
            a = jnp.pad(a, ((0, cpad - a.shape[0]), (0, 0)))
        taps = [shift(a, dy * sh + dx * sw) for dy in range(3) for dx in range(3)]
        stacked = jnp.concatenate(taps, axis=0).astype(jnp.bfloat16)   # (9*C, M)
        y = jnp.dot(wc_ref[layer], stacked, preferred_element_type=jnp.float32)
        return jnp.maximum(y + bc_ref[layer], 0.0)                      # f32

    def maxpool2x2(a, sh, sw):
        out = a
        for k in (sw, sh, sh + sw):
            out = jnp.maximum(out, shift(a, k))
        return out

    a = x_ref[...]                             # (C, M) f32, lane-dense
    sh, sw = width, 1                          # conv_block1 lattice strides
    a = conv3x3_relu(a, 0, sh, sw)             # 16 -> 14 (valid extent)
    a = conv3x3_relu(a, 1, sh, sw)             # 14 -> 12
    a = maxpool2x2(a, sh, sw)                  # 12 -> 6
    sh, sw = 2 * sh, 2 * sw                    # conv_block2 lattice strides
    a = conv3x3_relu(a, 2, sh, sw)             # 6 -> 4
    a = conv3x3_relu(a, 3, sh, sw)             # 4 -> 2
    a = maxpool2x2(a, sh, sw)                  # 2 -> 1 (valid value at col b*H*W)
    # Full-width FC: valid logits live at column j*H*W of packed image j; the
    # store stays unmasked / lane-dense and the tiny gather happens in XLA.
    logits = jnp.dot(fcw_ref[...], a.astype(jnp.bfloat16),
                     preferred_element_type=jnp.float32)
    out_ref[...] = (logits + fcb_ref[...]).astype(out_ref.dtype)


# --------------------------- wrappers -----------------------------------------

def prepare_params(params):
    """One-time repack of PyTorch-layout weights into kernel layout (outside jit).

    Conv weights (Cout, Cin, 3, 3) -> one (4, Cout, 9*Cmax) bf16 block where
    column tap*Cmax + cin (tap = dy*3 + dx) matches the in-kernel stacking of
    the 9 shifted activation copies; Cin is zero-padded to Cmax.
    """
    hidden = params["conv1_b"].shape[0]
    in_feature = params["conv1_w"].shape[1]
    cmax = max(in_feature, hidden)

    def pack_conv(w):
        co, ci = w.shape[0], w.shape[1]
        w = jnp.pad(w, ((0, 0), (0, cmax - ci), (0, 0), (0, 0)))
        w = jnp.transpose(w, (2, 3, 0, 1)).reshape(9, co, cmax)    # [tap, cout, cin]
        return jnp.transpose(w, (1, 0, 2)).reshape(co, 9 * cmax)   # [cout, tap*cmax+cin]

    wc = jnp.stack([pack_conv(params["conv1_w"]), pack_conv(params["conv2_w"]),
                    pack_conv(params["conv3_w"]), pack_conv(params["conv4_w"])])
    bc = jnp.stack([params["conv1_b"], params["conv2_b"],
                    params["conv3_b"], params["conv4_b"]])[..., None]
    return dict(
        wc=wc.astype(jnp.bfloat16),                              # (4, hidden, 9*cmax)
        bc=bc.astype(jnp.float32),                               # (4, hidden, 1)
        fcw=params["fc_w"].astype(jnp.bfloat16),                 # (out, hidden)
        fcb=params["fc_b"].reshape(-1, 1).astype(jnp.float32),   # (out, 1)
    )


_NB_MAX = 32   # images packed per grid step along the lane axis (~8 MiB live VMEM)


@jax.jit
def tiny_vgg_forward(kp, x_nchw):
    """Fused TinyVGG forward. x_nchw: (N, Cin, H, W) float32 -> (N, out_features)."""
    n, cin, h, w = x_nchw.shape
    hw = h * w
    out_features = kp["fcb"].shape[0]
    cmax = kp["wc"].shape[-1] // 9
    remaining = ((h - 4) // 2 - 4) // 2
    assert remaining == 1, "kernel supports remaining_dimensions == 1"
    # TODO(synk): generalize the classifier gather for remaining_dimensions > 1.

    # Pack NB images per grid step along lanes; keep >= 2 grid steps when N >= 2
    # so the "parallel" axis shards across both v7x TensorCores.
    nb = max(1, min(_NB_MAX, pl.cdiv(n, 2)))
    g = pl.cdiv(n, nb)

    x = jnp.pad(x_nchw.reshape(n, cin, hw),
                ((0, g * nb - n), (0, cmax - cin), (0, 0)))
    # (G*NB, Cmax, HW) -> (G, Cmax, NB*HW): image j of group b occupies lanes
    # [j*HW, (j+1)*HW).  Wrapper-side layout plumbing, done once per call.
    x = x.reshape(g, nb, cmax, hw).transpose(0, 2, 1, 3).reshape(g, cmax, nb * hw)

    out = pl.pallas_call(
        functools.partial(_tiny_vgg_kernel, width=w),
        out_shape=jax.ShapeDtypeStruct((g, out_features, nb * hw), jnp.float32),
        grid=(g,),
        in_specs=[
            pl.BlockSpec((pl.Squeezed(), cmax, nb * hw), lambda b: (b, 0, 0)),
            pl.BlockSpec(kp["wc"].shape, lambda b: (0, 0, 0)),
            pl.BlockSpec(kp["bc"].shape, lambda b: (0, 0, 0)),
            pl.BlockSpec(kp["fcw"].shape, lambda b: (0, 0)),
            pl.BlockSpec(kp["fcb"].shape, lambda b: (0, 0)),
        ],
        out_specs=pl.BlockSpec((pl.Squeezed(), out_features, nb * hw),
                               lambda b: (b, 0, 0)),
        compiler_params=pltpu.CompilerParams(
            dimension_semantics=("parallel",),
            vmem_limit_bytes=32 * 1024 * 1024),
    )(x, kp["wc"], kp["bc"], kp["fcw"], kp["fcb"])

    # The only valid classifier column of packed image j is lane j*hw; gather
    # and unpack with cheap XLA ops outside the kernel.
    logits = out[:, :, ::hw]                                    # (G, out, NB)
    return logits.transpose(0, 2, 1).reshape(g * nb, out_features)[:n]


# --------------------------- pure-JAX reference -------------------------------

def _reference_forward(params, x):
    """Independent reference (XLA conv/reduce_window), matches TinyVGG.forward."""
    def conv(x, w, b):
        y = jax.lax.conv_general_dilated(
            x, w, window_strides=(1, 1), padding="VALID",
            dimension_numbers=("NCHW", "OIHW", "NCHW"))
        return jax.nn.relu(y + b[None, :, None, None])

    def pool(x):
        return jax.lax.reduce_window(x, -jnp.inf, jax.lax.max,
                                     (1, 1, 2, 2), (1, 1, 2, 2), "VALID")

    x = pool(conv(conv(x, params["conv1_w"], params["conv1_b"]),
                  params["conv2_w"], params["conv2_b"]))
    x = pool(conv(conv(x, params["conv3_w"], params["conv3_b"]),
                  params["conv4_w"], params["conv4_b"]))
    x = x.reshape(x.shape[0], -1)                    # NCHW flatten (1x1 spatial)
    return x @ params["fc_w"].T + params["fc_b"]


# --------------------------- main ---------------------------------------------

if __name__ == "__main__":
    # spatial 16 -> 14 -> 12 -> pool -> 6 -> 4 -> 2 -> pool -> 1
    batch, in_feature, hidden_units, output_features, spatial = 2, 4, 8, 10, 16
    remaining_dimensions = 1

    key = jax.random.PRNGKey(0)
    ks = jax.random.split(key, 11)
    scale = 0.1
    params = {
        "conv1_w": scale * jax.random.normal(ks[0], (hidden_units, in_feature, 3, 3), jnp.float32),
        "conv1_b": scale * jax.random.normal(ks[1], (hidden_units,), jnp.float32),
        "conv2_w": scale * jax.random.normal(ks[2], (hidden_units, hidden_units, 3, 3), jnp.float32),
        "conv2_b": scale * jax.random.normal(ks[3], (hidden_units,), jnp.float32),
        "conv3_w": scale * jax.random.normal(ks[4], (hidden_units, hidden_units, 3, 3), jnp.float32),
        "conv3_b": scale * jax.random.normal(ks[5], (hidden_units,), jnp.float32),
        "conv4_w": scale * jax.random.normal(ks[6], (hidden_units, hidden_units, 3, 3), jnp.float32),
        "conv4_b": scale * jax.random.normal(ks[7], (hidden_units,), jnp.float32),
        "fc_w": scale * jax.random.normal(
            ks[8], (output_features, hidden_units * remaining_dimensions * remaining_dimensions),
            jnp.float32),
        "fc_b": scale * jax.random.normal(ks[9], (output_features,), jnp.float32),
    }
    x = jax.random.normal(ks[10], (batch, in_feature, spatial, spatial), jnp.float32)

    kparams = prepare_params(params)                 # hoisted weight repack (once)
    logits = tiny_vgg_forward(kparams, x)
    logits = jax.block_until_ready(logits)

    assert logits.shape == (batch, output_features), logits.shape
    assert jnp.all(jnp.isfinite(logits))
    ref = _reference_forward(params, x)
    max_err = float(jnp.max(jnp.abs(logits - ref)))
    # bf16 MXU operands (f32 accumulate) -> tolerance relaxed vs pure-f32 version.
    assert jnp.allclose(logits, ref, atol=2e-2, rtol=2e-2), f"max|err|={max_err}"
    print("KERNEL_OK")
</pallas_src>

<mosaic_0001>
module attributes {stable_mosaic.version = 11 : i64} {
  func.func @_tiny_vgg_kernel(%arg0: i32, %arg1: memref<1x8x256xf32, #tpu.memory_space<vmem>>, %arg2: memref<4x8x72xbf16, #tpu.memory_space<vmem>>, %arg3: memref<4x8x1xf32, #tpu.memory_space<vmem>>, %arg4: memref<10x8xbf16, #tpu.memory_space<vmem>>, %arg5: memref<10x1xf32, #tpu.memory_space<vmem>>, %arg6: memref<1x10x256xf32, #tpu.memory_space<vmem>>) attributes {dimension_semantics = [#tpu.dimension_semantics<parallel>], iteration_bounds = array<i64: 2>, scalar_prefetch = 0 : i64, scratch_operands = 0 : i64, tpu.core_type = #tpu.core_type<tc>, window_params = [{transform_indices = @transform_0, window_bounds = array<i64: 1, 8, 256>}, {pipeline_mode = #tpu.pipeline_mode<synchronous>, transform_indices = @transform_1, window_bounds = array<i64: 4, 8, 72>}, {pipeline_mode = #tpu.pipeline_mode<synchronous>, transform_indices = @transform_2, window_bounds = array<i64: 4, 8, 1>}, {pipeline_mode = #tpu.pipeline_mode<synchronous>, transform_indices = @transform_3, window_bounds = array<i64: 10, 8>}, {pipeline_mode = #tpu.pipeline_mode<synchronous>, transform_indices = @transform_4, window_bounds = array<i64: 10, 1>}, {transform_indices = @transform_5, window_bounds = array<i64: 1, 10, 256>}]} {
    %c0 = arith.constant 0 : index
    %c0_0 = arith.constant 0 : index
    %c0_1 = arith.constant 0 : index
    %0 = vector.load %arg1[%c0, %c0_0, %c0_1] : memref<1x8x256xf32, #tpu.memory_space<vmem>>, vector<1x8x256xf32>
    %1 = vector.shape_cast %0 : vector<1x8x256xf32> to vector<8x256xf32>
    %c255_i32 = arith.constant 255 : i32
    %2 = tpu.dynamic_rotate %1 by %c255_i32 dim 1 : vector<8x256xf32>, i32 -> vector<8x256xf32>
    %c254_i32 = arith.constant 254 : i32
    %3 = tpu.dynamic_rotate %1 by %c254_i32 dim 1 : vector<8x256xf32>, i32 -> vector<8x256xf32>
    %c240_i32 = arith.constant 240 : i32
    %4 = tpu.dynamic_rotate %1 by %c240_i32 dim 1 : vector<8x256xf32>, i32 -> vector<8x256xf32>
    %c239_i32 = arith.constant 239 : i32
    %5 = tpu.dynamic_rotate %1 by %c239_i32 dim 1 : vector<8x256xf32>, i32 -> vector<8x256xf32>
    %c238_i32 = arith.constant 238 : i32
    %6 = tpu.dynamic_rotate %1 by %c238_i32 dim 1 : vector<8x256xf32>, i32 -> vector<8x256xf32>
    %c224_i32 = arith.constant 224 : i32
    %7 = tpu.dynamic_rotate %1 by %c224_i32 dim 1 : vector<8x256xf32>, i32 -> vector<8x256xf32>
    %c223_i32 = arith.constant 223 : i32
    %8 = tpu.dynamic_rotate %1 by %c223_i32 dim 1 : vector<8x256xf32>, i32 -> vector<8x256xf32>
    %c222_i32 = arith.constant 222 : i32
    %9 = tpu.dynamic_rotate %1 by %c222_i32 dim 1 : vector<8x256xf32>, i32 -> vector<8x256xf32>
    %10 = tpu.concatenate %1, %2, %3, %4, %5, %6, %7, %8, %9 in 0 : vector<8x256xf32>, vector<8x256xf32>, vector<8x256xf32>, vector<8x256xf32>, vector<8x256xf32>, vector<8x256xf32>, vector<8x256xf32>, vector<8x256xf32>, vector<8x256xf32> -> vector<72x256xf32>
    %11 = arith.truncf %10 : vector<72x256xf32> to vector<72x256xbf16>
    %c0_2 = arith.constant 0 : index
    %c0_3 = arith.constant 0 : index
    %c0_4 = arith.constant 0 : index
    %12 = vector.load %arg2[%c0_2, %c0_3, %c0_4] : memref<4x8x72xbf16, #tpu.memory_space<vmem>>, vector<1x8x72xbf16>
    %13 = vector.shape_cast %12 : vector<1x8x72xbf16> to vector<8x72xbf16>
    %cst = arith.constant dense<0.000000e+00> : vector<8x256xf32>
    %14 = tpu.matmul %13, %11, %cst {dimension_numbers = #tpu.dot_dimension_numbers<[1], [0], [0], [1], [0, 0, 1, 1], [], []>} : vector<8x72xbf16>, vector<72x256xbf16>, vector<8x256xf32> -> vector<8x256xf32>
    %c0_5 = arith.constant 0 : index
    %c0_6 = arith.constant 0 : index
    %c0_7 = arith.constant 0 : index
    %15 = vector.load %arg3[%c0_5, %c0_6, %c0_7] : memref<4x8x1xf32, #tpu.memory_space<vmem>>, vector<1x8x1xf32>
    %16 = vector.shape_cast %15 : vector<1x8x1xf32> to vector<8x1xf32>
    %17 = vector.broadcast %16 : vector<8x1xf32> to vector<8x256xf32>
    %18 = arith.addf %14, %17 : vector<8x256xf32>
    %cst_8 = arith.constant 0.000000e+00 : f32
    %19 = vector.broadcast %cst_8 : f32 to vector<8x256xf32>
    %20 = arith.maximumf %18, %19 : vector<8x256xf32>
    %c255_i32_9 = arith.constant 255 : i32
    %21 = tpu.dynamic_rotate %20 by %c255_i32_9 dim 1 : vector<8x256xf32>, i32 -> vector<8x256xf32>
    %c254_i32_10 = arith.constant 254 : i32
    %22 = tpu.dynamic_rotate %20 by %c254_i32_10 dim 1 : vector<8x256xf32>, i32 -> vector<8x256xf32>
    %c240_i32_11 = arith.constant 240 : i32
    %23 = tpu.dynamic_rotate %20 by %c240_i32_11 dim 1 : vector<8x256xf32>, i32 -> vector<8x256xf32>
    %c239_i32_12 = arith.constant 239 : i32
    %24 = tpu.dynamic_rotate %20 by %c239_i32_12 dim 1 : vector<8x256xf32>, i32 -> vector<8x256xf32>
    %c238_i32_13 = arith.constant 238 : i32
    %25 = tpu.dynamic_rotate %20 by %c238_i32_13 dim 1 : vector<8x256xf32>, i32 -> vector<8x256xf32>
    %c224_i32_14 = arith.constant 224 : i32
    %26 = tpu.dynamic_rotate %20 by %c224_i32_14 dim 1 : vector<8x256xf32>, i32 -> vector<8x256xf32>
    %c223_i32_15 = arith.constant 223 : i32
    %27 = tpu.dynamic_rotate %20 by %c223_i32_15 dim 1 : vector<8x256xf32>, i32 -> vector<8x256xf32>
    %c222_i32_16 = arith.constant 222 : i32
    %28 = tpu.dynamic_rotate %20 by %c222_i32_16 dim 1 : vector<8x256xf32>, i32 -> vector<8x256xf32>
    %29 = tpu.concatenate %20, %21, %22, %23, %24, %25, %26, %27, %28 in 0 : vector<8x256xf32>, vector<8x256xf32>, vector<8x256xf32>, vector<8x256xf32>, vector<8x256xf32>, vector<8x256xf32>, vector<8x256xf32>, vector<8x256xf32>, vector<8x256xf32> -> vector<72x256xf32>
    %30 = arith.truncf %29 : vector<72x256xf32> to vector<72x256xbf16>
    %c1 = arith.constant 1 : index
    %c0_17 = arith.constant 0 : index
    %c0_18 = arith.constant 0 : index
    %31 = vector.load %arg2[%c1, %c0_17, %c0_18] : memref<4x8x72xbf16, #tpu.memory_space<vmem>>, vector<1x8x72xbf16>
    %32 = vector.shape_cast %31 : vector<1x8x72xbf16> to vector<8x72xbf16>
    %cst_19 = arith.constant dense<0.000000e+00> : vector<8x256xf32>
    %33 = tpu.matmul %32, %30, %cst_19 {dimension_numbers = #tpu.dot_dimension_numbers<[1], [0], [0], [1], [0, 0, 1, 1], [], []>} : vector<8x72xbf16>, vector<72x256xbf16>, vector<8x256xf32> -> vector<8x256xf32>
    %c1_20 = arith.constant 1 : index
    %c0_21 = arith.constant 0 : index
    %c0_22 = arith.constant 0 : index
    %34 = vector.load %arg3[%c1_20, %c0_21, %c0_22] : memref<4x8x1xf32, #tpu.memory_space<vmem>>, vector<1x8x1xf32>
    %35 = vector.shape_cast %34 : vector<1x8x1xf32> to vector<8x1xf32>
    %36 = vector.broadcast %35 : vector<8x1xf32> to vector<8x256xf32>
    %37 = arith.addf %33, %36 : vector<8x256xf32>
    %cst_23 = arith.constant 0.000000e+00 : f32
    %38 = vector.broadcast %cst_23 : f32 to vector<8x256xf32>
    %39 = arith.maximumf %37, %38 : vector<8x256xf32>
    %c255_i32_24 = arith.constant 255 : i32
    %40 = tpu.dynamic_rotate %39 by %c255_i32_24 dim 1 : vector<8x256xf32>, i32 -> vector<8x256xf32>
    %41 = arith.maximumf %39, %40 : vector<8x256xf32>
    %c240_i32_25 = arith.constant 240 : i32
    %42 = tpu.dynamic_rotate %39 by %c240_i32_25 dim 1 : vector<8x256xf32>, i32 -> vector<8x256xf32>
    %43 = arith.maximumf %41, %42 : vector<8x256xf32>
    %c239_i32_26 = arith.constant 239 : i32
    %44 = tpu.dynamic_rotate %39 by %c239_i32_26 dim 1 : vector<8x256xf32>, i32 -> vector<8x256xf32>
    %45 = arith.maximumf %43, %44 : vector<8x256xf32>
    %c254_i32_27 = arith.constant 254 : i32
    %46 = tpu.dynamic_rotate %45 by %c254_i32_27 dim 1 : vector<8x256xf32>, i32 -> vector<8x256xf32>
    %c252_i32 = arith.constant 252 : i32
    %47 = tpu.dynamic_rotate %45 by %c252_i32 dim 1 : vector<8x256xf32>, i32 -> vector<8x256xf32>
    %c224_i32_28 = arith.constant 224 : i32
    %48 = tpu.dynamic_rotate %45 by %c224_i32_28 dim 1 : vector<8x256xf32>, i32 -> vector<8x256xf32>
    %c222_i32_29 = arith.constant 222 : i32
    %49 = tpu.dynamic_rotate %45 by %c222_i32_29 dim 1 : vector<8x256xf32>, i32 -> vector<8x256xf32>
    %c220_i32 = arith.constant 220 : i32
    %50 = tpu.dynamic_rotate %45 by %c220_i32 dim 1 : vector<8x256xf32>, i32 -> vector<8x256xf32>
    %c192_i32 = arith.constant 192 : i32
    %51 = tpu.dynamic_rotate %45 by %c192_i32 dim 1 : vector<8x256xf32>, i32 -> vector<8x256xf32>
    %c190_i32 = arith.constant 190 : i32
    %52 = tpu.dynamic_rotate %45 by %c190_i32 dim 1 : vector<8x256xf32>, i32 -> vector<8x256xf32>
    %c188_i32 = arith.constant 188 : i32
    %53 = tpu.dynamic_rotate %45 by %c188_i32 dim 1 : vector<8x256xf32>, i32 -> vector<8x256xf32>
    %54 = tpu.concatenate %45, %46, %47, %48, %49, %50, %51, %52, %53 in 0 : vector<8x256xf32>, vector<8x256xf32>, vector<8x256xf32>, vector<8x256xf32>, vector<8x256xf32>, vector<8x256xf32>, vector<8x256xf32>, vector<8x256xf32>, vector<8x256xf32> -> vector<72x256xf32>
    %55 = arith.truncf %54 : vector<72x256xf32> to vector<72x256xbf16>
    %c2 = arith.constant 2 : index
    %c0_30 = arith.constant 0 : index
    %c0_31 = arith.constant 0 : index
    %56 = vector.load %arg2[%c2, %c0_30, %c0_31] : memref<4x8x72xbf16, #tpu.memory_space<vmem>>, vector<1x8x72xbf16>
    %57 = vector.shape_cast %56 : vector<1x8x72xbf16> to vector<8x72xbf16>
    %cst_32 = arith.constant dense<0.000000e+00> : vector<8x256xf32>
    %58 = tpu.matmul %57, %55, %cst_32 {dimension_numbers = #tpu.dot_dimension_numbers<[1], [0], [0], [1], [0, 0, 1, 1], [], []>} : vector<8x72xbf16>, vector<72x256xbf16>, vector<8x256xf32> -> vector<8x256xf32>
    %c2_33 = arith.constant 2 : index
    %c0_34 = arith.constant 0 : index
    %c0_35 = arith.constant 0 : index
    %59 = vector.load %arg3[%c2_33, %c0_34, %c0_35] : memref<4x8x1xf32, #tpu.memory_space<vmem>>, vector<1x8x1xf32>
    %60 = vector.shape_cast %59 : vector<1x8x1xf32> to vector<8x1xf32>
    %61 = vector.broadcast %60 : vector<8x1xf32> to vector<8x256xf32>
    %62 = arith.addf %58, %61 : vector<8x256xf32>
    %cst_36 = arith.constant 0.000000e+00 : f32
    %63 = vector.broadcast %cst_36 : f32 to vector<8x256xf32>
    %64 = arith.maximumf %62, %63 : vector<8x256xf32>
    %c254_i32_37 = arith.constant 254 : i32
    %65 = tpu.dynamic_rotate %64 by %c254_i32_37 dim 1 : vector<8x256xf32>, i32 -> vector<8x256xf32>
    %c252_i32_38 = arith.constant 252 : i32
    %66 = tpu.dynamic_rotate %64 by %c252_i32_38 dim 1 : vector<8x256xf32>, i32 -> vector<8x256xf32>
    %c224_i32_39 = arith.constant 224 : i32
    %67 = tpu.dynamic_rotate %64 by %c224_i32_39 dim 1 : vector<8x256xf32>, i32 -> vector<8x256xf32>
    %c222_i32_40 = arith.constant 222 : i32
    %68 = tpu.dynamic_rotate %64 by %c222_i32_40 dim 1 : vector<8x256xf32>, i32 -> vector<8x256xf32>
    %c220_i32_41 = arith.constant 220 : i32
    %69 = tpu.dynamic_rotate %64 by %c220_i32_41 dim 1 : vector<8x256xf32>, i32 -> vector<8x256xf32>
    %c192_i32_42 = arith.constant 192 : i32
    %70 = tpu.dynamic_rotate %64 by %c192_i32_42 dim 1 : vector<8x256xf32>, i32 -> vector<8x256xf32>
    %c190_i32_43 = arith.constant 190 : i32
    %71 = tpu.dynamic_rotate %64 by %c190_i32_43 dim 1 : vector<8x256xf32>, i32 -> vector<8x256xf32>
    %c188_i32_44 = arith.constant 188 : i32
    %72 = tpu.dynamic_rotate %64 by %c188_i32_44 dim 1 : vector<8x256xf32>, i32 -> vector<8x256xf32>
    %73 = tpu.concatenate %64, %65, %66, %67, %68, %69, %70, %71, %72 in 0 : vector<8x256xf32>, vector<8x256xf32>, vector<8x256xf32>, vector<8x256xf32>, vector<8x256xf32>, vector<8x256xf32>, vector<8x256xf32>, vector<8x256xf32>, vector<8x256xf32> -> vector<72x256xf32>
    %74 = arith.truncf %73 : vector<72x256xf32> to vector<72x256xbf16>
    %c3 = arith.constant 3 : index
    %c0_45 = arith.constant 0 : index
    %c0_46 = arith.constant 0 : index
    %75 = vector.load %arg2[%c3, %c0_45, %c0_46] : memref<4x8x72xbf16, #tpu.memory_space<vmem>>, vector<1x8x72xbf16>
    %76 = vector.shape_cast %75 : vector<1x8x72xbf16> to vector<8x72xbf16>
    %cst_47 = arith.constant dense<0.000000e+00> : vector<8x256xf32>
    %77 = tpu.matmul %76, %74, %cst_47 {dimension_numbers = #tpu.dot_dimension_numbers<[1], [0], [0], [1], [0, 0, 1, 1], [], []>} : vector<8x72xbf16>, vector<72x256xbf16>, vector<8x256xf32> -> vector<8x256xf32>
    %c3_48 = arith.constant 3 : index
    %c0_49 = arith.constant 0 : index
    %c0_50 = arith.constant 0 : index
    %78 = vector.load %arg3[%c3_48, %c0_49, %c0_50] : memref<4x8x1xf32, #tpu.memory_space<vmem>>, vector<1x8x1xf32>
    %79 = vector.shape_cast %78 : vector<1x8x1xf32> to vector<8x1xf32>
    %80 = vector.broadcast %79 : vector<8x1xf32> to vector<8x256xf32>
    %81 = arith.addf %77, %80 : vector<8x256xf32>
    %cst_51 = arith.constant 0.000000e+00 : f32
    %82 = vector.broadcast %cst_51 : f32 to vector<8x256xf32>
    %83 = arith.maximumf %81, %82 : vector<8x256xf32>
    %c254_i32_52 = arith.constant 254 : i32
    %84 = tpu.dynamic_rotate %83 by %c254_i32_52 dim 1 : vector<8x256xf32>, i32 -> vector<8x256xf32>
    %85 = arith.maximumf %83, %84 : vector<8x256xf32>
    %c224_i32_53 = arith.constant 224 : i32
    %86 = tpu.dynamic_rotate %83 by %c224_i32_53 dim 1 : vector<8x256xf32>, i32 -> vector<8x256xf32>
    %87 = arith.maximumf %85, %86 : vector<8x256xf32>
    %c222_i32_54 = arith.constant 222 : i32
    %88 = tpu.dynamic_rotate %83 by %c222_i32_54 dim 1 : vector<8x256xf32>, i32 -> vector<8x256xf32>
    %89 = arith.maximumf %87, %88 : vector<8x256xf32>
    %c0_55 = arith.constant 0 : index
    %c0_56 = arith.constant 0 : index
    %90 = vector.load %arg4[%c0_55, %c0_56] : memref<10x8xbf16, #tpu.memory_space<vmem>>, vector<10x8xbf16>
    %91 = arith.truncf %89 : vector<8x256xf32> to vector<8x256xbf16>
    %cst_57 = arith.constant dense<0.000000e+00> : vector<10x256xf32>
    %92 = tpu.matmul %90, %91, %cst_57 {dimension_numbers = #tpu.dot_dimension_numbers<[1], [0], [0], [1], [0, 0, 1, 1], [], []>} : vector<10x8xbf16>, vector<8x256xbf16>, vector<10x256xf32> -> vector<10x256xf32>
    %c0_58 = arith.constant 0 : index
    %c0_59 = arith.constant 0 : index
    %93 = vector.load %arg5[%c0_58, %c0_59] : memref<10x1xf32, #tpu.memory_space<vmem>>, vector<10x1xf32>
    %94 = vector.broadcast %93 : vector<10x1xf32> to vector<10x256xf32>
    %95 = arith.addf %92, %94 : vector<10x256xf32>
    %c0_60 = arith.constant 0 : index
    %c0_61 = arith.constant 0 : index
    %c0_62 = arith.constant 0 : index
    %96 = vector.load %arg6[%c0_60, %c0_61, %c0_62] : memref<1x10x256xf32, #tpu.memory_space<vmem>>, vector<1x10x256xf32>
    %97 = vector.shape_cast %96 : vector<1x10x256xf32> to vector<10x256xf32>
    %98 = vector.shape_cast %95 : vector<10x256xf32> to vector<1x10x256xf32>
    tpu.vector_store %arg6[%c0_60, %c0_61, %c0_62], %98 {strides = array<i32>} : memref<1x10x256xf32, #tpu.memory_space<vmem>>, vector<1x10x256xf32>,
    return
  }
  func.func @transform_0(%arg0: i32) -> (i32, i32, i32) {
    %c0_i32 = arith.constant 0 : i32
    %c0_i32_0 = arith.constant 0 : i32
    %c0_i32_1 = arith.constant 0 : i32
    return %arg0, %c0_i32, %c0_i32_0 : i32, i32, i32
  }
  func.func @transform_1(%arg0: i32) -> (i32, i32, i32) {
    %c0_i32 = arith.constant 0 : i32
    %c0_i32_0 = arith.constant 0 : i32
    %c0_i32_1 = arith.constant 0 : i32
    %c0_i32_2 = arith.constant 0 : i32
    return %c0_i32, %c0_i32_0, %c0_i32_1 : i32, i32, i32
  }
  func.func @transform_2(%arg0: i32) -> (i32, i32, i32) {
    %c0_i32 = arith.constant 0 : i32
    %c0_i32_0 = arith.constant 0 : i32
    %c0_i32_1 = arith.constant 0 : i32
    %c0_i32_2 = arith.constant 0 : i32
    return %c0_i32, %c0_i32_0, %c0_i32_1 : i32, i32, i32
  }
  func.func @transform_3(%arg0: i32) -> (i32, i32) {
    %c0_i32 = arith.constant 0 : i32
    %c0_i32_0 = arith.constant 0 : i32
    %c0_i32_1 = arith.constant 0 : i32
    return %c0_i32, %c0_i32_0 : i32, i32
  }
  func.func @transform_4(%arg0: i32) -> (i32, i32) {
    %c0_i32 = arith.constant 0 : i32
    %c0_i32_0 = arith.constant 0 : i32
    %c0_i32_1 = arith.constant 0 : i32
    return %c0_i32, %c0_i32_0 : i32, i32
  }
  func.func @transform_5(%arg0: i32) -> (i32, i32, i32) {
    %c0_i32 = arith.constant 0 : i32
    %c0_i32_0 = arith.constant 0 : i32
    %c0_i32_1 = arith.constant 0 : i32
    return %arg0, %c0_i32, %c0_i32_0 : i32, i32, i32
  }
}

</mosaic_0001>

<llo_original>
// kernel: tiny_vgg_forward.1
$region0: #{tiny_vgg_forward.1}
  #allocation0 [shape = 'u32[]', space=smem, size = 0x4, offset = 0x4, fixed_abs, tag = 'smem constant byte address 0x4 - core index']
  #allocation1 [shape = 'u32[72,128]{1,0:T(1,128)}', space=vmem, size = 0x9000, scoped, tag = 'internal scratch']
  %s0 = inlined_call_operand.vmem [shape: f32[2,8,256], index: 0, kind: input, shape index: {}]
  %s1 = inlined_call_operand.vmem [shape: bf16[4,8,72], index: 1, kind: input, shape index: {}]
  %s2 = inlined_call_operand.vmem [shape: f32[4,8,1], index: 2, kind: input, shape index: {}]
  %s3 = inlined_call_operand.vmem [shape: bf16[10,8], index: 3, kind: input, shape index: {}]
  %s4 = inlined_call_operand.vmem [shape: f32[10,1], index: 4, kind: input, shape index: {}]
  %s5 = inlined_call_operand.vmem [shape: f32[2,10,256], index: 5, kind: output, shape index: {}]
  %s6 = sld [smem:[#allocation0]]
  $region53: #{tiny_vgg_forward.1} parent=0
    _
  %s8 = ssub.s32 1, %s6
  %s9 = scalar_select 0, %s8, %s6
  loop: start=0, step=1, limit=4
  $region2: #{tiny_vgg_forward.1} parent=0 // loop_pre_header
    _
  $region3: #{tiny_vgg_forward.1} parent=0 // loop_header
    %s11 = sphi 0, %s15
    %p12 = scmp.ge.s32.totalorder %s11, 4
    %s21 = sphi 0, %s23
    %s24 = sphi 0, %s21
    %s25 = sphi 0, %s24
    %s41 = sphi 0, %s25
    %s45 = sphi 0, %s45
    %s47 = sphi 0, %s45
    %s48 = sphi 0, %s47
    %s62 = sphi 0, %s48
    %s66 = sphi 0, %s66
    %s68 = sphi 0, %s66
    %s69 = sphi 0, %s68
    %s83 = sphi 0, %s69
    %s87 = sphi 0, %s87
    %s89 = sphi 0, %s87
    %s90 = sphi 0, %s89
    %s104 = sphi 0, %s90
    %s108 = sphi 0, %s108
    %s110 = sphi 0, %s108
    %s111 = sphi 0, %s110
    %s125 = sphi 0, %s111
    %s131 = sphi 0, %s133
    %s134 = sphi 0, %s131
    %s135 = sphi 0, %s134
    %s151 = sphi 0, %s135
  $region4: #{tiny_vgg_forward.1} parent=0 // loop_header_branch
    %14 = sbr.rel (%p12) target = $region8
  $region5: #{tiny_vgg_forward.1} parent=0 // loop_body
    %s16 = ssub.s32 %s11, 1
    %s17 = ssub.s32 %s11, 2
    %s18 = sadd.s32 %s11, 1
    %s19 = ssub.s32 %s11, %s18
    %p20 = scmp.eq.s32.totalorder %s19, 0
    %s22 = sadd.s32 %s21, 1
    %s23 = scalar_select %p20, %s21, %s22
    %p26 = pneg %p20
    %p27 = scmp.eq.s32.totalorder %s11, 1
    %p28 = por %p26, %p27
    %p29 = scmp.ne.s32.totalorder %s21, %s24
    %p30 = scmp.eq.s32.totalorder %s11, 0
    %p31 = por %p29, %p30
    %p32 = scmp.ne.s32.totalorder %s21, %s24
    %p33 = scmp.eq.s32.totalorder %s16, 1
    %p34 = por %p32, %p33
    %p35 = scmp.ne.s32.totalorder %s24, %s25
    %p36 = scmp.eq.s32.totalorder %s16, 0
    %p37 = por %p35, %p36
    %p38 = scmp.ne.s32.totalorder %s24, %s25
    %p39 = scmp.eq.s32.totalorder %s17, 1
    %p40 = por %p38, %p39
    %p42 = scmp.ne.s32.totalorder %s25, %s41
    %p43 = scmp.eq.s32.totalorder %s17, 0
    %p44 = por %p42, %p43
    %s46 = sadd.s32 %s45, 1
    %p49 = scmp.eq.s32.totalorder %s11, 1
    %p50 = scmp.ne.s32.totalorder %s45, %s47
    %p51 = scmp.eq.s32.totalorder %s11, 0
    %p52 = por %p50, %p51
    %p53 = scmp.ne.s32.totalorder %s45, %s47
    %p54 = scmp.eq.s32.totalorder %s16, 1
    %p55 = por %p53, %p54
    %p56 = scmp.ne.s32.totalorder %s47, %s48
    %p57 = scmp.eq.s32.totalorder %s16, 0
    %p58 = por %p56, %p57
    %p59 = scmp.ne.s32.totalorder %s47, %s48
    %p60 = scmp.eq.s32.totalorder %s17, 1
    %p61 = por %p59, %p60
    %p63 = scmp.ne.s32.totalorder %s48, %s62
    %p64 = scmp.eq.s32.totalorder %s17, 0
    %p65 = por %p63, %p64
    %s67 = sadd.s32 %s66, 1
    %p70 = scmp.eq.s32.totalorder %s11, 1
    %p71 = scmp.ne.s32.totalorder %s66, %s68
    %p72 = scmp.eq.s32.totalorder %s11, 0
    %p73 = por %p71, %p72
    %p74 = scmp.ne.s32.totalorder %s66, %s68
    %p75 = scmp.eq.s32.totalorder %s16, 1
    %p76 = por %p74, %p75
    %p77 = scmp.ne.s32.totalorder %s68, %s69
    %p78 = scmp.eq.s32.totalorder %s16, 0
    %p79 = por %p77, %p78
    %p80 = scmp.ne.s32.totalorder %s68, %s69
    %p81 = scmp.eq.s32.totalorder %s17, 1
    %p82 = por %p80, %p81
    %p84 = scmp.ne.s32.totalorder %s69, %s83
    %p85 = scmp.eq.s32.totalorder %s17, 0
    %p86 = por %p84, %p85
    %s88 = sadd.s32 %s87, 1
    %p91 = scmp.eq.s32.totalorder %s11, 1
    %p92 = scmp.ne.s32.totalorder %s87, %s89
    %p93 = scmp.eq.s32.totalorder %s11, 0
    %p94 = por %p92, %p93
    %p95 = scmp.ne.s32.totalorder %s87, %s89
    %p96 = scmp.eq.s32.totalorder %s16, 1
    %p97 = por %p95, %p96
    %p98 = scmp.ne.s32.totalorder %s89, %s90
    %p99 = scmp.eq.s32.totalorder %s16, 0
    %p100 = por %p98, %p99
    %p101 = scmp.ne.s32.totalorder %s89, %s90
    %p102 = scmp.eq.s32.totalorder %s17, 1
    %p103 = por %p101, %p102
    %p105 = scmp.ne.s32.totalorder %s90, %s104
    %p106 = scmp.eq.s32.totalorder %s17, 0
    %p107 = por %p105, %p106
    %s109 = sadd.s32 %s108, 1
    %p112 = scmp.eq.s32.totalorder %s11, 1
    %p113 = scmp.ne.s32.totalorder %s108, %s110
    %p114 = scmp.eq.s32.totalorder %s11, 0
    %p115 = por %p113, %p114
    %p116 = scmp.ne.s32.totalorder %s108, %s110
    %p117 = scmp.eq.s32.totalorder %s16, 1
    %p118 = por %p116, %p117
    %p119 = scmp.ne.s32.totalorder %s110, %s111
    %p120 = scmp.eq.s32.totalorder %s16, 0
    %p121 = por %p119, %p120
    %p122 = scmp.ne.s32.totalorder %s110, %s111
    %p123 = scmp.eq.s32.totalorder %s17, 1
    %p124 = por %p122, %p123
    %p126 = scmp.ne.s32.totalorder %s111, %s125
    %p127 = scmp.eq.s32.totalorder %s17, 0
    %p128 = por %p126, %p127
    %s129 = ssub.s32 %s11, %s18
    %p130 = scmp.eq.s32.totalorder %s129, 0
    %s132 = sadd.s32 %s131, 1
    %s133 = scalar_select %p130, %s131, %s132
    %p136 = pneg %p130
    %p137 = scmp.eq.s32.totalorder %s11, 1
    %p138 = por %p136, %p137
    %p139 = scmp.ne.s32.totalorder %s131, %s134
    %p140 = scmp.eq.s32.totalorder %s11, 0
    %p141 = por %p139, %p140
    %p142 = scmp.ne.s32.totalorder %s131, %s134
    %p143 = scmp.eq.s32.totalorder %s16, 1
    %p144 = por %p142, %p143
    %p145 = scmp.ne.s32.totalorder %s134, %s135
    %p146 = scmp.eq.s32.totalorder %s16, 0
    %p147 = por %p145, %p146
    %p148 = scmp.ne.s32.totalorder %s134, %s135
    %p149 = scmp.eq.s32.totalorder %s17, 1
    %p150 = por %p148, %p149
    %p152 = scmp.ne.s32.totalorder %s135, %s151
    %p153 = scmp.eq.s32.totalorder %s17, 0
    %p154 = por %p152, %p153
    %p155 = scmp.le.s32.totalorder 1, %s11
    %p156 = scmp.lt.s32.totalorder %s11, 3
    %p157 = pnand %p155, %p156
    %p158 = pneg %p157
    // Predicated region
    $region9: #{tiny_vgg_forward.1} parent=5 // pred_check
      _
    $region10: #{tiny_vgg_forward.1} parent=5 // pred_check_branch
      %160 = sbr.rel (%p157) target = $region12
    $region11: #{tiny_vgg_forward.1} parent=5 // pred_region
      %s161 = ssub.s32 %s11, 1
      // Predicated region
      $region13: #{tiny_vgg_forward.1} parent=11 // pred_check
        %p162 = pneg %p58
      $region14: #{tiny_vgg_forward.1} parent=11 // pred_check_branch
        %164 = sbr.rel (%p162) target = $region16
      $region15: #{tiny_vgg_forward.1} parent=11 // pred_region
        _
      $region16: #{tiny_vgg_forward.1} parent=11 // pred_fallthru
        _
      // Predicated region
      $region17: #{tiny_vgg_forward.1} parent=11 // pred_check
        %p165 = pneg %p79
      $region18: #{tiny_vgg_forward.1} parent=11 // pred_check_branch
        %167 = sbr.rel (%p165) target = $region20
      $region19: #{tiny_vgg_forward.1} parent=11 // pred_region
        _
      $region20: #{tiny_vgg_forward.1} parent=11 // pred_fallthru
        _
      // Predicated region
      $region21: #{tiny_vgg_forward.1} parent=11 // pred_check
        %p168 = pneg %p100
      $region22: #{tiny_vgg_forward.1} parent=11 // pred_check_branch
        %170 = sbr.rel (%p168) target = $region24
      $region23: #{tiny_vgg_forward.1} parent=11 // pred_region
        _
      $region24: #{tiny_vgg_forward.1} parent=11 // pred_fallthru
        _
      // Predicated region
      $region25: #{tiny_vgg_forward.1} parent=11 // pred_check
        %p171 = pneg %p121
      $region26: #{tiny_vgg_forward.1} parent=11 // pred_check_branch
        %173 = sbr.rel (%p171) target = $region28
      $region27: #{tiny_vgg_forward.1} parent=11 // pred_region
        _
      $region28: #{tiny_vgg_forward.1} parent=11 // pred_fallthru
        _
    $region12: #{tiny_vgg_forward.1} parent=5 // pred_fallthru
      _
    %p174 = scmp.lt.s32.totalorder %s11, 2
    // Predicated region
    $region29: #{tiny_vgg_forward.1} parent=5 // pred_check
      %p175 = pneg %p174
    $region30: #{tiny_vgg_forward.1} parent=5 // pred_check_branch
      %177 = sbr.rel (%p175) target = $region32
    $region31: #{tiny_vgg_forward.1} parent=5 // pred_region
      // Predicated region
      $region33: #{tiny_vgg_forward.1} parent=31 // pred_check
        %p178 = pneg %p31
      $region34: #{tiny_vgg_forward.1} parent=31 // pred_check_branch
        %180 = sbr.rel (%p178) target = $region36
      $region35: #{tiny_vgg_forward.1} parent=31 // pred_region
        %p181 = scmp.lt.s32.totalorder %s11, 1
        %s182 = scalar_select %p181, %s11, 1
        %s183 = smul.addr %s182, 2
        %s184 = smul.addr %s183, 8
        %s185 = scalar_lea.vmem %s0, %s184
      $region36: #{tiny_vgg_forward.1} parent=31 // pred_fallthru
        _
    $region32: #{tiny_vgg_forward.1} parent=5 // pred_fallthru
      _
    %p186 = scmp.le.s32.totalorder 1, %s11
    %p187 = scmp.lt.s32.totalorder %s11, 3
    %p188 = pnand %p186, %p187
    %p189 = pneg %p188
    // Predicated region
    $region37: #{tiny_vgg_forward.1} parent=5 // pred_check
      _
    $region38: #{tiny_vgg_forward.1} parent=5 // pred_check_branch
      %191 = sbr.rel (%p188) target = $region40
    $region39: #{tiny_vgg_forward.1} parent=5 // pred_region
      %s192 = ssub.s32 %s11, 1
      %p193 = scmp.lt.s32.totalorder %s16, 1
      %s194 = scalar_select %p193, %s16, 1
      %s195 = smul.addr %s194, 2
      %s196 = smul.addr %s195, 8
      %s197 = scalar_lea.vmem %s0, %s196
      %p198 = pneg %p37
      %p199 = pneg %p34
      %p200 = pneg %p58
      %p201 = pneg %p55
      %p202 = pneg %p79
      %p203 = pneg %p76
      %p204 = pneg %p100
      %p205 = pneg %p97
      %p206 = pneg %p121
      %p207 = pneg %p118
      %p208 = pneg %p147
      %p209 = pneg %p144
      %p210 = scmp.lt.s32.totalorder %s16, 1
      %s211 = scalar_select %p210, %s16, 1
      %s212 = smul.addr %s211, 4
      %s213 = smul.addr %s212, 8
      %s214 = scalar_lea.vmem %s5, %s213
      %p215 = scmp.lt.s32.totalorder %s16, 1
      %s216 = scalar_select %p215, %s16, 1
      %s217 = smul.addr %s216, 2
      %s218 = smul.addr %s217, 8
      %s219 = scalar_lea.vmem %s0, %s218
      %p220 = scmp.lt.s32.totalorder %s16, 1
      %s221 = scalar_select %p220, %s16, 1
      %s222 = smul.addr %s221, 4
      %s223 = smul.addr %s222, 8
      %s224 = scalar_lea.vmem %s5, %s223
      %v226 = vld [vmem:[%s219] sm:$0xff]
      %v227 = vld [vmem:[%s219 + $0x8] sm:$0xff]
      %228 = vrot.lane.b32.xlu0 %v226, 127
      %v229 = vpop.permute.xlu0 %228
      %230 = vrot.lane.b32.xlu0 %v227, 127
      %v231 = vpop.permute.xlu0 %230
      %v232 = vlaneseq
      %v233 = vand.u32 %v232, 127
      %vm234 = vcmp.lt.s32.totalorder %v233, 127
      %v235 = vsel %vm234, %v229, %v231
      %v236 = vsel %vm234, %v231, %v229
      %237 = vrot.lane.b32.xlu0 %v226, 126
      %v238 = vpop.permute.xlu0 %237
      %239 = vrot.lane.b32.xlu0 %v227, 126
      %v240 = vpop.permute.xlu0 %239
      %vm241 = vcmp.lt.s32.totalorder %v233, 126
      %v242 = vsel %vm241, %v238, %v240
      %v243 = vsel %vm241, %v240, %v238
      %244 = vrot.lane.b32.xlu0 %v226, 112
      %v245 = vpop.permute.xlu0 %244
      %246 = vrot.lane.b32.xlu0 %v227, 112
      %v247 = vpop.permute.xlu0 %246
      %vm248 = vcmp.lt.s32.totalorder %v233, 112
      %v249 = vsel %vm248, %v245, %v247
      %v250 = vsel %vm248, %v247, %v245
      %251 = vrot.lane.b32.xlu0 %v226, 111
      %v252 = vpop.permute.xlu0 %251
      %253 = vrot.lane.b32.xlu0 %v227, 111
      %v254 = vpop.permute.xlu0 %253
      %vm255 = vcmp.lt.s32.totalorder %v233, 111
      %v256 = vsel %vm255, %v252, %v254
      %v257 = vsel %vm255, %v254, %v252
      %258 = vrot.lane.b32.xlu0 %v226, 110
      %v259 = vpop.permute.xlu0 %258
      %260 = vrot.lane.b32.xlu0 %v227, 110
      %v261 = vpop.permute.xlu0 %260
      %vm262 = vcmp.lt.s32.totalorder %v233, 110
      %v263 = vsel %vm262, %v259, %v261
      %v264 = vsel %vm262, %v261, %v259
      %265 = vrot.lane.b32.xlu0 %v226, 96
      %v266 = vpop.permute.xlu0 %265
      %267 = vrot.lane.b32.xlu0 %v227, 96
      %v268 = vpop.permute.xlu0 %267
      %vm269 = vcmp.lt.s32.totalorder %v233, 96
      %v270 = vsel %vm269, %v266, %v268
      %v271 = vsel %vm269, %v268, %v266
      %272 = vrot.lane.b32.xlu0 %v226, 95
      %v273 = vpop.permute.xlu0 %272
      %274 = vrot.lane.b32.xlu0 %v227, 95
      %v275 = vpop.permute.xlu0 %274
      %vm276 = vcmp.lt.s32.totalorder %v233, 95
      %v277 = vsel %vm276, %v273, %v275
      %v278 = vsel %vm276, %v275, %v273
      %279 = vrot.lane.b32.xlu0 %v226, 94
      %v280 = vpop.permute.xlu0 %279
      %281 = vrot.lane.b32.xlu0 %v227, 94
      %v282 = vpop.permute.xlu0 %281
      %vm283 = vcmp.lt.s32.totalorder %v233, 94
      %v284 = vsel %vm283, %v280, %v282
      %v285 = vsel %vm283, %v282, %v280
      %v286 = vpack.c.bf16 %v235, %v226
      %v287 = vpack.c.bf16 %v236, %v227
      %v288 = vpack.c.bf16 %v249, %v242
      %v289 = vpack.c.bf16 %v250, %v243
      %v290 = vpack.c.bf16 %v263, %v256
      %v291 = vpack.c.bf16 %v264, %v257
      %v292 = vpack.c.bf16 %v277, %v270
      %v293 = vpack.c.bf16 %v278, %v271
      %v294 = vpack.c.bf16 %v284, %v284
      %v295 = vpack.c.bf16 %v285, %v285
      %v296 = vld [vmem:[%s1] sm:$0xf]
      %v297 = vld [vmem:[%s2] sm:$0xff]
      %299 = vset.pattern.permute.xlu0 0
      %300 = vperm.xlu0 %299, %v297
      %v301 = vpop.permute.xlu0 %300
      %vm303 = vcmask 588800
      %v305 = vsel %vm303, %v296, 0
      %vm307 = vcmask 1043456
      %v309 = vsel %vm307, %v294, 0
      %v312 = vsel %vm307, %v295, 0
      %314 = vmatpush.bf16.msra.mxu0 0
      %315 = vmatpush.bf16.msra.mxu0 0
      %316 = vmatpush.bf16.msra.mxu0 0
      %317 = vmatpush.bf16.msra.mxu0 %v309
      %318 = vmatpush.bf16.msra.mxu0 %v292
      %319 = vmatpush.bf16.msra.mxu0 %v290
      %320 = vmatpush.bf16.msra.mxu0 %v288
      %321 = vmatpush.bf16.msra.mxu0 %v286
      %322 = vmatmul.bf16.gmra.mxu0 %v305
      %v323 = vpop.f32.mrf.mxu0
      %v324 = vadd.f32 %v301, %v323
      %v325 = vpop.f32.mrf.mxu0
      %326 = vdwg.mxu0
      %327 = vmatpush.bf16.msra.mxu0 0
      %328 = vmatpush.bf16.msra.mxu0 0
      %329 = vmatpush.bf16.msra.mxu0 0
      %330 = vmatpush.bf16.msra.mxu0 %v312
      %331 = vmatpush.bf16.msra.mxu0 %v293
      %332 = vmatpush.bf16.msra.mxu0 %v291
      %333 = vmatpush.bf16.msra.mxu0 %v289
      %334 = vmatpush.bf16.msra.mxu0 %v287
      %335 = vmatmul.bf16.gmra.mxu0 %v305
      %v336 = vpop.f32.mrf.mxu0
      %v337 = vadd.f32 %v301, %v336
      %v338 = vpop.f32.mrf.mxu0
      %339 = vdwg.mxu0
      %v340 = vmax.f32 %v324, 0.0
      %v341 = vmax.f32 %v337, 0.0
      %342 = vrot.lane.b32.xlu0 %v340, 127
      %v343 = vpop.permute.xlu0 %342
      %344 = vrot.lane.b32.xlu0 %v341, 127
      %v345 = vpop.permute.xlu0 %344
      %v346 = vsel %vm234, %v343, %v345
      %v347 = vsel %vm234, %v345, %v343
      %348 = vrot.lane.b32.xlu0 %v340, 126
      %v349 = vpop.permute.xlu0 %348
      %350 = vrot.lane.b32.xlu0 %v341, 126
      %v351 = vpop.permute.xlu0 %350
      %v352 = vsel %vm241, %v349, %v351
      %v353 = vsel %vm241, %v351, %v349
      %354 = vrot.lane.b32.xlu0 %v340, 112
      %v355 = vpop.permute.xlu0 %354
      %356 = vrot.lane.b32.xlu0 %v341, 112
      %v357 = vpop.permute.xlu0 %356
      %v358 = vsel %vm248, %v355, %v357
      %v359 = vsel %vm248, %v357, %v355
      %360 = vrot.lane.b32.xlu0 %v340, 111
      %v361 = vpop.permute.xlu0 %360
      %362 = vrot.lane.b32.xlu0 %v341, 111
      %v363 = vpop.permute.xlu0 %362
      %v364 = vsel %vm255, %v361, %v363
      %v365 = vsel %vm255, %v363, %v361
      %366 = vrot.lane.b32.xlu0 %v340, 110
      %v367 = vpop.permute.xlu0 %366
      %368 = vrot.lane.b32.xlu0 %v341, 110
      %v369 = vpop.permute.xlu0 %368
      %v370 = vsel %vm262, %v367, %v369
      %v371 = vsel %vm262, %v369, %v367
      %372 = vrot.lane.b32.xlu0 %v340, 96
      %v373 = vpop.permute.xlu0 %372
      %374 = vrot.lane.b32.xlu0 %v341, 96
      %v375 = vpop.permute.xlu0 %374
      %v376 = vsel %vm269, %v373, %v375
      %v377 = vsel %vm269, %v375, %v373
      %378 = vrot.lane.b32.xlu0 %v340, 95
      %v379 = vpop.permute.xlu0 %378
      %380 = vrot.lane.b32.xlu0 %v341, 95
      %v381 = vpop.permute.xlu0 %380
      %v382 = vsel %vm276, %v379, %v381
      %v383 = vsel %vm276, %v381, %v379
      %384 = vrot.lane.b32.xlu0 %v340, 94
      %v385 = vpop.permute.xlu0 %384
      %386 = vrot.lane.b32.xlu0 %v341, 94
      %v387 = vpop.permute.xlu0 %386
      %v388 = vsel %vm283, %v385, %v387
      %v389 = vsel %vm283, %v387, %v385
      %v390 = vpack.c.bf16 %v346, %v340
      %v391 = vpack.c.bf16 %v347, %v341
      %v392 = vpack.c.bf16 %v358, %v352
      %v393 = vpack.c.bf16 %v359, %v353
      %v394 = vpack.c.bf16 %v370, %v364
      %v395 = vpack.c.bf16 %v371, %v365
      %v396 = vpack.c.bf16 %v382, %v376
      %v397 = vpack.c.bf16 %v383, %v377
      %v398 = vpack.c.bf16 %v388, %v388
      %v399 = vpack.c.bf16 %v389, %v389
      %s400 = scalar_lea.vmem %s1, 4
      %v401 = vld [vmem:[%s400] sm:$0xf]
      %s402 = scalar_lea.vmem %s2, 8
      %v403 = vld [vmem:[%s402] sm:$0xff]
      %405 = vset.pattern.permute.xlu0 0
      %406 = vperm.xlu0 %405, %v403
      %v407 = vpop.permute.xlu0 %406
      %v410 = vsel %vm303, %v401, 0
      %v413 = vsel %vm307, %v398, 0
      %v416 = vsel %vm307, %v399, 0
      %418 = vmatpush.bf16.msra.mxu0 0
      %419 = vmatpush.bf16.msra.mxu0 0
      %420 = vmatpush.bf16.msra.mxu0 0
      %421 = vmatpush.bf16.msra.mxu0 %v413
      %422 = vmatpush.bf16.msra.mxu0 %v396
      %423 = vmatpush.bf16.msra.mxu0 %v394
      %424 = vmatpush.bf16.msra.mxu0 %v392
      %425 = vmatpush.bf16.msra.mxu0 %v390
      %426 = vmatmul.bf16.gmra.mxu0 %v410
      %v427 = vpop.f32.mrf.mxu0
      %v428 = vadd.f32 %v407, %v427
      %v429 = vpop.f32.mrf.mxu0
      %430 = vdwg.mxu0
      %431 = vmatpush.bf16.msra.mxu0 0
      %432 = vmatpush.bf16.msra.mxu0 0
      %433 = vmatpush.bf16.msra.mxu0 0
      %434 = vmatpush.bf16.msra.mxu0 %v416
      %435 = vmatpush.bf16.msra.mxu0 %v397
      %436 = vmatpush.bf16.msra.mxu0 %v395
      %437 = vmatpush.bf16.msra.mxu0 %v393
      %438 = vmatpush.bf16.msra.mxu0 %v391
      %439 = vmatmul.bf16.gmra.mxu0 %v410
      %v440 = vpop.f32.mrf.mxu0
      %v441 = vadd.f32 %v407, %v440
      %v442 = vpop.f32.mrf.mxu0
      %443 = vdwg.mxu0
      %v444 = vmax.f32 %v428, 0.0
      %v445 = vmax.f32 %v441, 0.0
      %446 = vrot.lane.b32.xlu0 %v444, 127
      %v447 = vpop.permute.xlu0 %446
      %448 = vrot.lane.b32.xlu0 %v445, 127
      %v449 = vpop.permute.xlu0 %448
      %v450 = vsel %vm234, %v447, %v449
      %v451 = vsel %vm234, %v449, %v447
      %v452 = vmax.f32 %v444, %v450
      %v453 = vmax.f32 %v445, %v451
      %454 = vrot.lane.b32.xlu0 %v444, 112
      %v455 = vpop.permute.xlu0 %454
      %456 = vrot.lane.b32.xlu0 %v445, 112
      %v457 = vpop.permute.xlu0 %456
      %v458 = vsel %vm248, %v455, %v457
      %v459 = vsel %vm248, %v457, %v455
      %v460 = vmax.f32 %v452, %v458
      %v461 = vmax.f32 %v453, %v459
      %462 = vrot.lane.b32.xlu0 %v444, 111
      %v463 = vpop.permute.xlu0 %462
      %464 = vrot.lane.b32.xlu0 %v445, 111
      %v465 = vpop.permute.xlu0 %464
      %v466 = vsel %vm255, %v463, %v465
      %v467 = vsel %vm255, %v465, %v463
      %v468 = vmax.f32 %v460, %v466
      %v469 = vmax.f32 %v461, %v467
      %470 = vrot.lane.b32.xlu0 %v468, 126
      %v471 = vpop.permute.xlu0 %470
      %472 = vrot.lane.b32.xlu0 %v469, 126
      %v473 = vpop.permute.xlu0 %472
      %v474 = vsel %vm241, %v471, %v473
      %v475 = vsel %vm241, %v473, %v471
      %476 = vrot.lane.b32.xlu0 %v468, 124
      %v477 = vpop.permute.xlu0 %476
      %478 = vrot.lane.b32.xlu0 %v469, 124
      %v479 = vpop.permute.xlu0 %478
      %vm480 = vcmp.lt.s32.totalorder %v233, 124
      %v481 = vsel %vm480, %v477, %v479
      %v482 = vsel %vm480, %v479, %v477
      %483 = vrot.lane.b32.xlu0 %v468, 96
      %v484 = vpop.permute.xlu0 %483
      %485 = vrot.lane.b32.xlu0 %v469, 96
      %v486 = vpop.permute.xlu0 %485
      %v487 = vsel %vm269, %v484, %v486
      %v488 = vsel %vm269, %v486, %v484
      %489 = vrot.lane.b32.xlu0 %v468, 94
      %v490 = vpop.permute.xlu0 %489
      %491 = vrot.lane.b32.xlu0 %v469, 94
      %v492 = vpop.permute.xlu0 %491
      %v493 = vsel %vm283, %v490, %v492
      %v494 = vsel %vm283, %v492, %v490
      %495 = vrot.lane.b32.xlu0 %v468, 92
      %v496 = vpop.permute.xlu0 %495
      %497 = vrot.lane.b32.xlu0 %v469, 92
      %v498 = vpop.permute.xlu0 %497
      %vm499 = vcmp.lt.s32.totalorder %v233, 92
      %v500 = vsel %vm499, %v496, %v498
      %v501 = vsel %vm499, %v498, %v496
      %502 = vrot.lane.b32.xlu0 %v468, 64
      %v503 = vpop.permute.xlu0 %502
      %504 = vrot.lane.b32.xlu0 %v469, 64
      %v505 = vpop.permute.xlu0 %504
      %vm506 = vcmp.lt.s32.totalorder %v233, 64
      %v507 = vsel %vm506, %v503, %v505
      %v508 = vsel %vm506, %v505, %v503
      %509 = vrot.lane.b32.xlu0 %v468, 62
      %v510 = vpop.permute.xlu0 %509
      %511 = vrot.lane.b32.xlu0 %v469, 62
      %v512 = vpop.permute.xlu0 %511
      %vm513 = vcmp.lt.s32.totalorder %v233, 62
      %v514 = vsel %vm513, %v510, %v512
      %v515 = vsel %vm513, %v512, %v510
      %516 = vrot.lane.b32.xlu0 %v468, 60
      %v517 = vpop.permute.xlu0 %516
      %518 = vrot.lane.b32.xlu0 %v469, 60
      %v519 = vpop.permute.xlu0 %518
      %vm520 = vcmp.lt.s32.totalorder %v233, 60
      %v521 = vsel %vm520, %v517, %v519
      %v522 = vsel %vm520, %v519, %v517
      %v523 = vpack.c.bf16 %v474, %v468
      %v524 = vpack.c.bf16 %v475, %v469
      %v525 = vpack.c.bf16 %v487, %v481
      %v526 = vpack.c.bf16 %v488, %v482
      %v527 = vpack.c.bf16 %v500, %v493
      %v528 = vpack.c.bf16 %v501, %v494
      %v529 = vpack.c.bf16 %v514, %v507
      %v530 = vpack.c.bf16 %v515, %v508
      %v531 = vpack.c.bf16 %v521, %v521
      %v532 = vpack.c.bf16 %v522, %v522
      %s533 = scalar_lea.vmem %s1, 8
      %v534 = vld [vmem:[%s533] sm:$0xf]
      %s535 = scalar_lea.vmem %s2, 16
      %v536 = vld [vmem:[%s535] sm:$0xff]
      %538 = vset.pattern.permute.xlu0 0
      %539 = vperm.xlu0 %538, %v536
      %v540 = vpop.permute.xlu0 %539
      %v543 = vsel %vm303, %v534, 0
      %v546 = vsel %vm307, %v531, 0
      %v549 = vsel %vm307, %v532, 0
      %551 = vmatpush.bf16.msra.mxu0 0
      %552 = vmatpush.bf16.msra.mxu0 0
      %553 = vmatpush.bf16.msra.mxu0 0
      %554 = vmatpush.bf16.msra.mxu0 %v546
      %555 = vmatpush.bf16.msra.mxu0 %v529
      %556 = vmatpush.bf16.msra.mxu0 %v527
      %557 = vmatpush.bf16.msra.mxu0 %v525
      %558 = vmatpush.bf16.msra.mxu0 %v523
      %559 = vmatmul.bf16.gmra.mxu0 %v543
      %v560 = vpop.f32.mrf.mxu0
      %v561 = vadd.f32 %v540, %v560
      %v562 = vpop.f32.mrf.mxu0
      %563 = vdwg.mxu0
      %564 = vmatpush.bf16.msra.mxu0 0
      %565 = vmatpush.bf16.msra.mxu0 0
      %566 = vmatpush.bf16.msra.mxu0 0
      %567 = vmatpush.bf16.msra.mxu0 %v549
      %568 = vmatpush.bf16.msra.mxu0 %v530
      %569 = vmatpush.bf16.msra.mxu0 %v528
      %570 = vmatpush.bf16.msra.mxu0 %v526
      %571 = vmatpush.bf16.msra.mxu0 %v524
      %572 = vmatmul.bf16.gmra.mxu0 %v543
      %v573 = vpop.f32.mrf.mxu0
      %v574 = vadd.f32 %v540, %v573
      %v575 = vpop.f32.mrf.mxu0
      %576 = vdwg.mxu0
      %v577 = vmax.f32 %v561, 0.0
      %v578 = vmax.f32 %v574, 0.0
      %579 = vrot.lane.b32.xlu0 %v577, 126
      %v580 = vpop.permute.xlu0 %579
      %581 = vrot.lane.b32.xlu0 %v578, 126
      %v582 = vpop.permute.xlu0 %581
      %v583 = vsel %vm241, %v580, %v582
      %v584 = vsel %vm241, %v582, %v580
      %585 = vrot.lane.b32.xlu0 %v577, 124
      %v586 = vpop.permute.xlu0 %585
      %587 = vrot.lane.b32.xlu0 %v578, 124
      %v588 = vpop.permute.xlu0 %587
      %v589 = vsel %vm480, %v586, %v588
      %v590 = vsel %vm480, %v588, %v586
      %591 = vrot.lane.b32.xlu0 %v577, 96
      %v592 = vpop.permute.xlu0 %591
      %593 = vrot.lane.b32.xlu0 %v578, 96
      %v594 = vpop.permute.xlu0 %593
      %v595 = vsel %vm269, %v592, %v594
      %v596 = vsel %vm269, %v594, %v592
      %597 = vrot.lane.b32.xlu0 %v577, 94
      %v598 = vpop.permute.xlu0 %597
      %599 = vrot.lane.b32.xlu0 %v578, 94
      %v600 = vpop.permute.xlu0 %599
      %v601 = vsel %vm283, %v598, %v600
      %v602 = vsel %vm283, %v600, %v598
      %603 = vrot.lane.b32.xlu0 %v577, 92
      %v604 = vpop.permute.xlu0 %603
      %605 = vrot.lane.b32.xlu0 %v578, 92
      %v606 = vpop.permute.xlu0 %605
      %v607 = vsel %vm499, %v604, %v606
      %v608 = vsel %vm499, %v606, %v604
      %609 = vrot.lane.b32.xlu0 %v577, 64
      %v610 = vpop.permute.xlu0 %609
      %611 = vrot.lane.b32.xlu0 %v578, 64
      %v612 = vpop.permute.xlu0 %611
      %v613 = vsel %vm506, %v610, %v612
      %v614 = vsel %vm506, %v612, %v610
      %615 = vrot.lane.b32.xlu0 %v577, 62
      %v616 = vpop.permute.xlu0 %615
      %617 = vrot.lane.b32.xlu0 %v578, 62
      %v618 = vpop.permute.xlu0 %617
      %v619 = vsel %vm513, %v616, %v618
      %v620 = vsel %vm513, %v618, %v616
      %621 = vrot.lane.b32.xlu0 %v577, 60
      %v622 = vpop.permute.xlu0 %621
      %623 = vrot.lane.b32.xlu0 %v578, 60
      %v624 = vpop.permute.xlu0 %623
      %v625 = vsel %vm520, %v622, %v624
      %v626 = vsel %vm520, %v624, %v622
      %v627 = vpack.c.bf16 %v583, %v577
      %v628 = vpack.c.bf16 %v584, %v578
      %v629 = vpack.c.bf16 %v595, %v589
      %v630 = vpack.c.bf16 %v596, %v590
      %v631 = vpack.c.bf16 %v607, %v601
      %v632 = vpack.c.bf16 %v608, %v602
      %v633 = vpack.c.bf16 %v619, %v613
      %v634 = vpack.c.bf16 %v620, %v614
      %v635 = vpack.c.bf16 %v625, %v625
      %v636 = vpack.c.bf16 %v626, %v626
      %s637 = scalar_lea.vmem %s1, 12
      %v638 = vld [vmem:[%s637] sm:$0xf]
      %s639 = scalar_lea.vmem %s2, 24
      %v640 = vld [vmem:[%s639] sm:$0xff]
      %642 = vset.pattern.permute.xlu0 0
      %643 = vperm.xlu0 %642, %v640
      %v644 = vpop.permute.xlu0 %643
      %v647 = vsel %vm303, %v638, 0
      %v650 = vsel %vm307, %v635, 0
      %v653 = vsel %vm307, %v636, 0
      %655 = vmatpush.bf16.msra.mxu0 0
      %656 = vmatpush.bf16.msra.mxu0 0
      %657 = vmatpush.bf16.msra.mxu0 0
      %658 = vmatpush.bf16.msra.mxu0 %v650
      %659 = vmatpush.bf16.msra.mxu0 %v633
      %660 = vmatpush.bf16.msra.mxu0 %v631
      %661 = vmatpush.bf16.msra.mxu0 %v629
      %662 = vmatpush.bf16.msra.mxu0 %v627
      %663 = vmatmul.bf16.gmra.mxu0 %v647
      %v664 = vpop.f32.mrf.mxu0
      %v665 = vadd.f32 %v644, %v664
      %v666 = vpop.f32.mrf.mxu0
      %667 = vdwg.mxu0
      %668 = vmatpush.bf16.msra.mxu0 0
      %669 = vmatpush.bf16.msra.mxu0 0
      %670 = vmatpush.bf16.msra.mxu0 0
      %671 = vmatpush.bf16.msra.mxu0 %v653
      %672 = vmatpush.bf16.msra.mxu0 %v634
      %673 = vmatpush.bf16.msra.mxu0 %v632
      %674 = vmatpush.bf16.msra.mxu0 %v630
      %675 = vmatpush.bf16.msra.mxu0 %v628
      %676 = vmatmul.bf16.gmra.mxu0 %v647
      %v677 = vpop.f32.mrf.mxu0
      %v678 = vadd.f32 %v644, %v677
      %v679 = vpop.f32.mrf.mxu0
      %680 = vdwg.mxu0
      %v681 = vmax.f32 %v665, 0.0
      %v682 = vmax.f32 %v678, 0.0
      %683 = vrot.lane.b32.xlu0 %v681, 126
      %v684 = vpop.permute.xlu0 %683
      %685 = vrot.lane.b32.xlu0 %v682, 126
      %v686 = vpop.permute.xlu0 %685
      %v687 = vsel %vm241, %v684, %v686
      %v688 = vsel %vm241, %v686, %v684
      %v689 = vmax.f32 %v681, %v687
      %v690 = vmax.f32 %v682, %v688
      %691 = vrot.lane.b32.xlu0 %v681, 96
      %v692 = vpop.permute.xlu0 %691
      %693 = vrot.lane.b32.xlu0 %v682, 96
      %v694 = vpop.permute.xlu0 %693
      %v695 = vsel %vm269, %v692, %v694
      %v696 = vsel %vm269, %v694, %v692
      %v697 = vmax.f32 %v689, %v695
      %v698 = vmax.f32 %v690, %v696
      %699 = vrot.lane.b32.xlu0 %v681, 94
      %v700 = vpop.permute.xlu0 %699
      %701 = vrot.lane.b32.xlu0 %v682, 94
      %v702 = vpop.permute.xlu0 %701
      %v703 = vsel %vm283, %v700, %v702
      %v704 = vsel %vm283, %v702, %v700
      %v705 = vmax.f32 %v697, %v703
      %v706 = vmax.f32 %v698, %v704
      %v707 = vld [vmem:[%s3] sm:$0xf]
      %v708 = vld [vmem:[%s3 + $0x4] sm:$0x1]
      %v709 = vpack.c.bf16 %v705, %v705
      %v710 = vpack.c.bf16 %v706, %v706
      %v711 = vld [vmem:[%s4] sm:$0xff]
      %v712 = vld [vmem:[%s4 + $0x8] sm:$0x3]
      %714 = vset.pattern.permute.xlu0 0
      %715 = vperm.xlu0 %714, %v711
      %v716 = vpop.permute.xlu0 %715
      %719 = vset.pattern.permute.xlu0 0
      %720 = vperm.xlu0 %719, %v712
      %v721 = vpop.permute.xlu0 %720
      %v725 = vunpack.c.l.b16 %v707
      %v726 = vunpack.c.l.b16 %v708
      %v727 = vpack.c.b16 %v726, %v725
      %vm728 = vcmask 64512
      %v730 = vsel %vm728, %v727, 0
      %v733 = vsel %vm307, %v709, 0
      %v736 = vsel %vm307, %v710, 0
      %738 = vmatpush.bf16.msra.mxu0 0
      %739 = vmatpush.bf16.msra.mxu0 0
      %740 = vmatpush.bf16.msra.mxu0 0
      %741 = vmatpush.bf16.msra.mxu0 0
      %742 = vmatpush.bf16.msra.mxu0 0
      %743 = vmatpush.bf16.msra.mxu0 0
      %744 = vmatpush.bf16.msra.mxu0 0
      %745 = vmatpush.bf16.msra.mxu0 %v733
      %746 = vmatmul.bf16.gmra.mxu0 %v730
      %v747 = vpop.f32.mrf.mxu0
      %v748 = vadd.f32 %v716, %v747
      %v749 = vpop.f32.mrf.mxu0
      %v750 = vadd.f32 %v721, %v749
      %751 = vdwg.mxu0
      %752 = vmatpush.bf16.msra.mxu0 0
      %753 = vmatpush.bf16.msra.mxu0 0
      %754 = vmatpush.bf16.msra.mxu0 0
      %755 = vmatpush.bf16.msra.mxu0 0
      %756 = vmatpush.bf16.msra.mxu0 0
      %757 = vmatpush.bf16.msra.mxu0 0
      %758 = vmatpush.bf16.msra.mxu0 0
      %759 = vmatpush.bf16.msra.mxu0 %v736
      %760 = vmatmul.bf16.gmra.mxu0 %v730
      %v761 = vpop.f32.mrf.mxu0
      %v762 = vadd.f32 %v716, %v761
      %v763 = vpop.f32.mrf.mxu0
      %v764 = vadd.f32 %v721, %v763
      %765 = vdwg.mxu0
      %766 = vst [vmem:[%s224] sm:$0xff] %v748
      %767 = vst [vmem:[%s224 + $0x8] sm:$0xff] %v762
      %768 = vst [vmem:[%s224 + $0x10] sm:$0x3] %v750
      %769 = vst [vmem:[%s224 + $0x18] sm:$0x3] %v764
      %p770 = scmp.lt.s32.totalorder %s16, 1
      %s771 = scalar_select %p770, %s16, 1
      %s772 = smul.addr %s771, 4
      %s773 = smul.addr %s772, 8
      %s774 = scalar_lea.vmem %s5, %s773
      // Predicated region
      $region41: #{tiny_vgg_forward.1} parent=39 // pred_check
        %p775 = pneg %p144
      $region42: #{tiny_vgg_forward.1} parent=39 // pred_check_branch
        %777 = sbr.rel (%p775) target = $region44
      $region43: #{tiny_vgg_forward.1} parent=39 // pred_region
        _
      $region44: #{tiny_vgg_forward.1} parent=39 // pred_fallthru
        _
    $region40: #{tiny_vgg_forward.1} parent=5 // pred_fallthru
      _
    %p778 = scmp.le.s32.totalorder 2, %s11
    // Predicated region
    $region45: #{tiny_vgg_forward.1} parent=5 // pred_check
      %p779 = pneg %p778
    $region46: #{tiny_vgg_forward.1} parent=5 // pred_check_branch
      %781 = sbr.rel (%p779) target = $region48
    $region47: #{tiny_vgg_forward.1} parent=5 // pred_region
      %s782 = ssub.s32 %s11, 2
      // Predicated region
      $region49: #{tiny_vgg_forward.1} parent=47 // pred_check
        %p783 = pneg %p150
      $region50: #{tiny_vgg_forward.1} parent=47 // pred_check_branch
        %785 = sbr.rel (%p783) target = $region52
      $region51: #{tiny_vgg_forward.1} parent=47 // pred_region
        %p786 = scmp.lt.s32.totalorder %s17, 1
        %s787 = scalar_select %p786, %s17, 1
        %s788 = smul.addr %s787, 4
        %s789 = smul.addr %s788, 8
        %s790 = scalar_lea.vmem %s5, %s789
      $region52: #{tiny_vgg_forward.1} parent=47 // pred_fallthru
        _
    $region48: #{tiny_vgg_forward.1} parent=5 // pred_fallthru
      _
  $region6: #{tiny_vgg_forward.1} parent=0 // loop_footer
    %s15 = sadd.s32 1, %s11
  $region7: #{tiny_vgg_forward.1} parent=0 // loop_footer_branch
    %10 = sbr.rel target = $region3
  $region8: #{tiny_vgg_forward.1} parent=0 // loop_exit
    _

</llo_original>
